<compile_context>
chip_gen: v7x
topology: tpu7x:2x2x1
jax: 0.10.0
libtpu: 0.0.40
codegen_flags: <defaults>
</compile_context>

<pallas_src>
import functools

import jax
import jax.numpy as jnp
from jax.experimental import pallas as pl
from jax.experimental.pallas import tpu as pltpu


def _round_up(x, mult):
    return (x + mult - 1) // mult * mult


def _cdiv(a, b):
    return (a + b - 1) // b


def _sublane_mult(dtype):
    # Sublane packing: 8 rows for 4-byte, 16 for 2-byte, 32 for 1-byte dtypes.
    return {4: 8, 2: 16, 1: 32}.get(jnp.dtype(dtype).itemsize, 8)


def _vmem_capacity_bytes():
    try:
        info = pltpu.get_tpu_info()
        cap = getattr(info, "vmem_capacity_bytes", None)
        if cap:
            return int(cap)
    except Exception:
        pass
    return 64 << 20  # conservative default (v7x per-TensorCore VMEM)


# ---------------------------------------------------------------------------
# Kernels
# ---------------------------------------------------------------------------
def _proj_kernel_fused(x_ref, w_ref, b_ref, o_ref):
    # Single K block: no accumulator scratch, bias fused into the store.
    o_ref[...] = (
        jnp.dot(x_ref[...], w_ref[...], preferred_element_type=jnp.float32)
        + b_ref[...].astype(jnp.float32)
    ).astype(o_ref.dtype)


def _proj_kernel_acc(x_ref, w_ref, b_ref, o_ref, acc_ref):
    # K-tiled reduction (K grid axis is last): f32 accumulator, init at k==0,
    # bias + downcast + store at k==last.
    @pl.when(pl.program_id(2) == 0)
    def _():
        acc_ref[...] = jnp.zeros_like(acc_ref)

    acc_ref[...] += jnp.dot(
        x_ref[...], w_ref[...], preferred_element_type=jnp.float32
    )

    @pl.when(pl.program_id(2) == pl.num_programs(2) - 1)
    def _():
        o_ref[...] = (
            acc_ref[...] + b_ref[...].astype(jnp.float32)
        ).astype(o_ref.dtype)


# ---------------------------------------------------------------------------
# Wrapper
# ---------------------------------------------------------------------------
@jax.jit
def seq_projection(x, weight_t, bias):
    """Forward of SeqProjection: y = x @ weight_t + bias.

    x:        (..., input_dim)
    weight_t: (input_dim, proj_dim)   -- nn.Linear weight, pre-transposed once
    bias:     (proj_dim,)
    """
    *lead, k = x.shape
    kw, n = weight_t.shape
    assert kw == k, "weight_t must be (input_dim, proj_dim)"

    m = 1
    for d in lead:
        m *= d

    dtype = x.dtype
    itemsize = jnp.dtype(dtype).itemsize
    sub = _sublane_mult(dtype)

    vmem_cap = _vmem_capacity_bytes()
    # Tile budget (leave room for double-buffering slop / compiler scratch).
    budget = min(int(vmem_cap * 0.45), 48 << 20)

    x2d = x.reshape(m, k)
    w = weight_t
    b2d = bias.reshape(1, n)

    # ---- K tiling -----------------------------------------------------
    # Typical projection layers have K small enough for a single block, which
    # removes the reduction loop, the accumulator scratch and any K padding.
    K_FULL_MAX = 2048
    if k <= K_FULL_MAX:
        tk, kp, grid_k = k, k, 1
    else:
        tk = 512
        kp = _round_up(k, tk)
        grid_k = kp // tk
        # Only K needs explicit zero-padding: garbage entering the contraction
        # would corrupt valid outputs.  (M/N partial blocks are simply dropped.)
        x2d = jnp.pad(x2d, ((0, 0), (0, kp - k)))
        w = jnp.pad(w, ((0, kp - k), (0, 0)))

    # ---- N tiling -----------------------------------------------------
    # Weight-resident fast path: keep the whole (tk, N) weight slab in VMEM
    # (constant block index) when it fits in ~half the budget.
    if 2 * tk * n * itemsize <= budget // 2:
        tn, grid_n = n, 1
    else:
        tn = 1024
        while tn > 128 and 2 * tk * tn * itemsize > budget // 2:
            tn //= 2
        grid_n = _cdiv(n, tn)

    # ---- M tiling -----------------------------------------------------
    # Largest MXU-friendly row tile that fits the remaining VMEM budget.
    fixed = 2 * tk * tn * itemsize + 2 * tn * itemsize          # W + bias bufs
    per_row = 2 * (tk * itemsize + tn * itemsize)               # x + out bufs
    if grid_k > 1:
        per_row += tn * 4                                       # f32 accumulator
    tm_fit = max((budget - fixed) // per_row, sub)
    tm = min(1024, int(tm_fit))
    tm = max((tm // sub) * sub, sub)

    if m <= tm:
        tm, grid_m = m, 1            # full-dim block: always layout-legal
    else:
        grid_m = _cdiv(m, tm)        # partial trailing block: OOB rows dropped

    # v7x megacore: guarantee >=2 blocks on a parallel axis for medium M.
    if grid_m * grid_n == 1 and m >= 2 * max(sub, 128):
        tm = _round_up(_cdiv(m, 2), sub)
        grid_m = _cdiv(m, tm)

    # ---- grid / index maps / kernel selection --------------------------
    if grid_k == 1:
        # 2-D grid; order axes so the larger operand is streamed from HBM once.
        m_outer = (grid_n == 1) or (m >= n)
        if m_outer:
            grid = (grid_m, grid_n)
            x_map = lambda i, j: (i, 0)
            w_map = lambda i, j: (0, j)
            b_map = lambda i, j: (0, j)
            o_map = lambda i, j: (i, j)
            x_passes = 1
            w_passes = grid_m if grid_n > 1 else 1
        else:
            grid = (grid_n, grid_m)
            x_map = lambda j, i: (i, 0)
            w_map = lambda j, i: (0, j)
            b_map = lambda j, i: (0, j)
            o_map = lambda j, i: (i, j)
            x_passes = grid_n if grid_m > 1 else 1
            w_passes = 1
        kernel = _proj_kernel_fused
        scratch = []
        dim_sem = ("parallel", "parallel")
    else:
        grid = (grid_m, grid_n, grid_k)
        x_map = lambda i, j, kk: (i, kk)
        w_map = lambda i, j, kk: (kk, j)
        b_map = lambda i, j, kk: (0, j)
        o_map = lambda i, j, kk: (i, j)
        x_passes = grid_n
        w_passes = grid_m
        kernel = _proj_kernel_acc
        scratch = [pltpu.VMEM((tm, tn), jnp.float32)]
        dim_sem = ("parallel", "parallel", "arbitrary")

    # ---- VMEM limit & cost hint ----------------------------------------
    footprint = (2 * tk * tn + 2 * tm * tk + 2 * tm * tn + 2 * tn) * itemsize
    if grid_k > 1:
        footprint += tm * tn * 4
    vmem_limit = int(min(max(footprint + (8 << 20), 32 << 20),
                         int(vmem_cap * 0.9)))

    cost = pl.CostEstimate(
        flops=int(2 * m * n * kp),
        transcendentals=0,
        bytes_accessed=int(
            (x_passes * m * kp + w_passes * kp * n + m * n + n) * itemsize
        ),
    )

    out2d = pl.pallas_call(
        kernel,
        out_shape=jax.ShapeDtypeStruct((m, n), dtype),
        grid_spec=pltpu.PrefetchScalarGridSpec(
            num_scalar_prefetch=0,
            grid=grid,
            in_specs=[
                pl.BlockSpec((tm, tk), x_map),
                pl.BlockSpec((tk, tn), w_map),
                pl.BlockSpec((1, tn), b_map),
            ],
            out_specs=pl.BlockSpec((tm, tn), o_map),
            scratch_shapes=scratch,
        ),
        compiler_params=pltpu.CompilerParams(
            dimension_semantics=dim_sem,
            vmem_limit_bytes=vmem_limit,
        ),
        cost_estimate=cost,
    )(x2d, w, b2d)

    return out2d.reshape(*lead, n)


def seq_projection_linear(x, weight, bias):
    """Convenience entry for nn.Linear-layout weights (proj_dim, input_dim).
    Prefer storing the weight pre-transposed and calling seq_projection()."""
    return seq_projection(x, weight.T, bias)


def init_seq_projection_params(key, input_dim, proj_dim, dtype=jnp.float32):
    """Parameters matching nn.Linear + xavier_uniform_, with the weight stored
    pre-transposed as (input_dim, proj_dim) so no per-call transpose is needed."""
    k_w, k_b = jax.random.split(key)
    # xavier_uniform_: U(-a, a), a = sqrt(6 / (fan_in + fan_out))
    a = (6.0 / (input_dim + proj_dim)) ** 0.5
    weight_t = jax.random.uniform(
        k_w, (input_dim, proj_dim), minval=-a, maxval=a, dtype=dtype
    )
    # nn.Linear default bias init: U(-1/sqrt(fan_in), 1/sqrt(fan_in))
    bound = 1.0 / (input_dim ** 0.5)
    bias = jax.random.uniform(
        k_b, (proj_dim,), minval=-bound, maxval=bound, dtype=dtype
    )
    return weight_t, bias


# TODO(synk): the PyTorch module's Python logging / tensor-stat logging has no
# kernel-side equivalent and is intentionally omitted.

if __name__ == "__main__":
    key = jax.random.PRNGKey(0)
    batch, seq, input_dim, proj_dim = 2, 8, 32, 64

    k_x, k_p = jax.random.split(key)
    x = jax.random.normal(k_x, (batch, seq, input_dim), dtype=jnp.float32)
    weight_t, bias = init_seq_projection_params(k_p, input_dim, proj_dim)

    out = seq_projection(x, weight_t, bias)
    out = jax.block_until_ready(out)

    # Reference check in plain JAX.
    ref = x @ weight_t + bias
    assert out.shape == (batch, seq, proj_dim)
    assert jnp.allclose(out, ref, atol=1e-5, rtol=1e-5)

    # Non-tile-aligned M: exercises partial trailing blocks (no HBM padding)
    # and the >=2-parallel-blocks (megacore) split.
    x2 = jax.random.normal(jax.random.PRNGKey(1), (3, 100, input_dim), jnp.float32)
    out2 = jax.block_until_ready(seq_projection(x2, weight_t, bias))
    ref2 = x2 @ weight_t + bias
    assert out2.shape == (3, 100, proj_dim)
    assert jnp.allclose(out2, ref2, atol=1e-5, rtol=1e-5)

    print("KERNEL_OK")
</pallas_src>

<mosaic_0001>
module attributes {stable_mosaic.version = 11 : i64} {
  func.func @_proj_kernel_fused(%arg0: i32, %arg1: i32, %arg2: memref<16x32xf32, #tpu.memory_space<vmem>>, %arg3: memref<32x64xf32, #tpu.memory_space<vmem>>, %arg4: memref<1x64xf32, #tpu.memory_space<vmem>>, %arg5: memref<16x64xf32, #tpu.memory_space<vmem>>) attributes {dimension_semantics = [#tpu.dimension_semantics<parallel>, #tpu.dimension_semantics<parallel>], iteration_bounds = array<i64: 1, 1>, scalar_prefetch = 0 : i64, scratch_operands = 0 : i64, tpu.core_type = #tpu.core_type<tc>, window_params = [{transform_indices = @transform_0, window_bounds = array<i64: 16, 32>}, {transform_indices = @transform_1, window_bounds = array<i64: 32, 64>}, {transform_indices = @transform_2, window_bounds = array<i64: 1, 64>}, {transform_indices = @transform_3, window_bounds = array<i64: 16, 64>}]} {
    %c0 = arith.constant 0 : index
    %c0_0 = arith.constant 0 : index
    %0 = vector.load %arg2[%c0, %c0_0] : memref<16x32xf32, #tpu.memory_space<vmem>>, vector<16x32xf32>
    %c0_1 = arith.constant 0 : index
    %c0_2 = arith.constant 0 : index
    %1 = vector.load %arg3[%c0_1, %c0_2] : memref<32x64xf32, #tpu.memory_space<vmem>>, vector<32x64xf32>
    %cst = arith.constant dense<0.000000e+00> : vector<16x64xf32>
    %2 = tpu.matmul %0, %1, %cst {dimension_numbers = #tpu.dot_dimension_numbers<[1], [0], [0], [1], [0, 0, 1, 1], [], []>} : vector<16x32xf32>, vector<32x64xf32>, vector<16x64xf32> -> vector<16x64xf32>
    %c0_3 = arith.constant 0 : index
    %c0_4 = arith.constant 0 : index
    %3 = vector.load %arg4[%c0_3, %c0_4] : memref<1x64xf32, #tpu.memory_space<vmem>>, vector<1x64xf32>
    %4 = vector.broadcast %3 : vector<1x64xf32> to vector<16x64xf32>
    %5 = arith.addf %2, %4 : vector<16x64xf32>
    %c0_5 = arith.constant 0 : index
    %c0_6 = arith.constant 0 : index
    %6 = vector.load %arg5[%c0_5, %c0_6] : memref<16x64xf32, #tpu.memory_space<vmem>>, vector<16x64xf32>
    tpu.vector_store %arg5[%c0_5, %c0_6], %5 {strides = array<i32>} : memref<16x64xf32, #tpu.memory_space<vmem>>, vector<16x64xf32>,
    return
  }
  func.func @transform_0(%arg0: i32, %arg1: i32) -> (i32, i32) {
    %c0_i32 = arith.constant 0 : i32
    %c0_i32_0 = arith.constant 0 : i32
    return %arg0, %c0_i32 : i32, i32
  }
  func.func @transform_1(%arg0: i32, %arg1: i32) -> (i32, i32) {
    %c0_i32 = arith.constant 0 : i32
    %c0_i32_0 = arith.constant 0 : i32
    return %c0_i32, %arg1 : i32, i32
  }
  func.func @transform_2(%arg0: i32, %arg1: i32) -> (i32, i32) {
    %c0_i32 = arith.constant 0 : i32
    %c0_i32_0 = arith.constant 0 : i32
    return %c0_i32, %arg1 : i32, i32
  }
  func.func @transform_3(%arg0: i32, %arg1: i32) -> (i32, i32) {
    %c0_i32 = arith.constant 0 : i32
    return %arg0, %arg1 : i32, i32
  }
}

</mosaic_0001>

<llo_original>
// kernel: seq_projection.1
$region0: #{seq_projection.1}
  #allocation0 [shape = 'u32[]', space=smem, size = 0x4, offset = 0x4, fixed_abs, tag = 'smem constant byte address 0x4 - core index']
  #allocation1 [shape = 'u32[144,128]{1,0:T(1,128)}', space=vmem, size = 0x12000, scoped, tag = 'internal scratch']
  %s0 = inlined_call_operand.hbm [shape: f32[16,32], index: 0, kind: input, shape index: {}]
  %s1 = inlined_call_operand.hbm [shape: f32[32,64], index: 1, kind: input, shape index: {}]
  %s2 = inlined_call_operand.vmem [shape: f32[1,64], index: 2, kind: input, shape index: {}]
  %s3 = inlined_call_operand.hbm [shape: f32[16,64], index: 3, kind: output, shape index: {}]
  %s4 = sld [smem:[#allocation0]]
  $region30: #{seq_projection.1} parent=0
    _
  %s6 = ssub.s32 1, %s4
  %s7 = scalar_select 0, %s6, %s4
  $region1: #{seq_projection.1} parent=0
    #allocation2 [shape = 'u8[8192]{0}', space=vmem, size = 0x2000, scoped, tag = 'input window, operand 0, single buffered']
    #allocation3 [shape = 's32[1]{0}', space=sflag, size = 0x4, scoped, tag = 'scoped memory for seq_projection.1']
    #allocation4 [shape = 's32[1]{0}', space=sflag, size = 0x4, scoped, tag = 'scoped memory for seq_projection.1']
    #allocation5 [shape = 'u8[16384]{0}', space=vmem, size = 0x4000, scoped, tag = 'input window, operand 1, single buffered']
    #allocation6 [shape = 's32[1]{0}', space=sflag, size = 0x4, scoped, tag = 'scoped memory for seq_projection.1']
    #allocation7 [shape = 'u8[8192]{0}', space=vmem, size = 0x2000, scoped, tag = 'output window, operand 0, single buffered']
    %8 = vsyncpa [#allocation3], 0
    %9 = vsyncpa [#allocation6], 0
    %10 = vsyncpa [#allocation4], 0
    // Predicated region
    $region2: #{seq_projection.1} parent=1 // pred_check
      _
    $region3: #{seq_projection.1} parent=1 // pred_check_branch
      %12 = sbr.rel (0) target = $region5
    $region4: #{seq_projection.1} parent=1 // pred_region
      %s14 = ssub.s32 256, 256
      %15 = vsyncadd [#allocation3], %s14
      %s16 = sshll.u32 [#allocation2], 4
      %s17 = int_to_ptr.vmem [resolvable:$true] %s16
      %22 = dma.hbm_to_vmem [thread:$0]  %s0, 256, %s17, [#allocation3], 128, 128, 8
    $region5: #{seq_projection.1} parent=1 // pred_fallthru
      _
    // Predicated region
    $region6: #{seq_projection.1} parent=1 // pred_check
      _
    $region7: #{seq_projection.1} parent=1 // pred_check_branch
      %24 = sbr.rel (0) target = $region9
    $region8: #{seq_projection.1} parent=1 // pred_region
      %s26 = ssub.s32 512, 512
      %27 = vsyncadd [#allocation6], %s26
      %s28 = sshll.u32 [#allocation5], 4
      %s29 = int_to_ptr.vmem [resolvable:$true] %s28
      %34 = dma.hbm_to_vmem [thread:$0]  %s1, 512, %s29, [#allocation6], 128, 128, 8
    $region9: #{seq_projection.1} parent=1 // pred_fallthru
      _
    // Predicated region
    $region10: #{seq_projection.1} parent=1 // pred_check
      _
    $region11: #{seq_projection.1} parent=1 // pred_check_branch
      %36 = sbr.rel (0) target = $region13
    $region12: #{seq_projection.1} parent=1 // pred_region
      _
    $region13: #{seq_projection.1} parent=1 // pred_fallthru
      _
    // Predicated region
    $region14: #{seq_projection.1} parent=1 // pred_check
      _
    $region15: #{seq_projection.1} parent=1 // pred_check_branch
      %38 = sbr.rel (0) target = $region17
    $region16: #{seq_projection.1} parent=1 // pred_region
      %39 = dma.done [#allocation3], 256
    $region17: #{seq_projection.1} parent=1 // pred_fallthru
      _
    // Predicated region
    $region18: #{seq_projection.1} parent=1 // pred_check
      _
    $region19: #{seq_projection.1} parent=1 // pred_check_branch
      %41 = sbr.rel (0) target = $region21
    $region20: #{seq_projection.1} parent=1 // pred_region
      %42 = dma.done [#allocation6], 512
    $region21: #{seq_projection.1} parent=1 // pred_fallthru
      _
    %v43 = vld [vmem:[#allocation2] sm:$0xff]
    %v44 = vld [vmem:[#allocation2 + $0x8] sm:$0xff]
    %v45 = vld [vmem:[#allocation5] sm:$0xff]
    %v46 = vld [vmem:[#allocation5 + $0x8] sm:$0xff]
    %v47 = vld [vmem:[#allocation5 + $0x10] sm:$0xff]
    %v48 = vld [vmem:[#allocation5 + $0x18] sm:$0xff]
    %v49 = vld [vmem:[%s2] sm:$0x1]
    %v51 = vlaneseq
    %v52 = vshrl.u32 %v51, 7
    %v53 = vsub.s32 0, %v52
    %v54 = vrot.slane %v49, %v53
    %vm56 = vcmask 261120
    %v58 = vsel %vm56, %v43, 0
    %v61 = vsel %vm56, %v44, 0
    %63 = vmatprep.subr.mxu0 0.0
    %64 = vmatpush1.msra.mxu0 %v45
    %65 = vmatprep.subr.mxu0 0.0
    %66 = vmatpush1.msra.mxu0 %v46
    %67 = vmatprep.subr.mxu0 0.0
    %68 = vmatpush1.msra.mxu0 %v47
    %69 = vmatprep.subr.mxu0 0.0
    %70 = vmatpush1.msra.mxu0 %v48
    %71 = vmatprep.subr.mxu0 0.0
    %72 = vmatpush1.msra.mxu0 0.0
    %73 = vmatprep.subr.mxu0 0.0
    %74 = vmatpush1.msra.mxu0 0.0
    %75 = vmatprep.subr.mxu0 0.0
    %76 = vmatpush1.msra.mxu0 0.0
    %77 = vmatprep.subr.mxu0 0.0
    %78 = vmatpush1.msra.mxu0 0.0
    %79 = vmatprep.subr.mxu0 0.0
    %80 = vmatpush1.msra.mxu0 0.0
    %81 = vmatprep.subr.mxu0 0.0
    %82 = vmatpush1.msra.mxu0 0.0
    %83 = vmatprep.subr.mxu0 0.0
    %84 = vmatpush1.msra.mxu0 0.0
    %85 = vmatprep.subr.mxu0 0.0
    %86 = vmatpush1.msra.mxu0 0.0
    %87 = vmatprep.subr.mxu0 0.0
    %88 = vmatpush1.msra.mxu0 0.0
    %89 = vmatprep.subr.mxu0 0.0
    %90 = vmatpush1.msra.mxu0 0.0
    %91 = vmatprep.subr.mxu0 0.0
    %92 = vmatpush1.msra.mxu0 0.0
    %93 = vmatprep.subr.mxu0 0.0
    %94 = vmatpush1.msra.mxu0 0.0
    %95 = vmatprep.subr.mxu0 0.0
    %96 = vmatpush1.msra.mxu0 0.0
    %97 = vmatprep.subr.mxu0 0.0
    %98 = vmatpush1.msra.mxu0 0.0
    %99 = vmatprep.subr.mxu0 0.0
    %100 = vmatpush1.msra.mxu0 0.0
    %101 = vmatprep.subr.mxu0 0.0
    %102 = vmatpush1.msra.mxu0 0.0
    %103 = vmatprep.subr.mxu0 0.0
    %104 = vmatpush1.msra.mxu0 0.0
    %105 = vmatprep.subr.mxu0 0.0
    %106 = vmatpush1.msra.mxu0 0.0
    %107 = vmatprep.subr.mxu0 0.0
    %108 = vmatpush1.msra.mxu0 0.0
    %109 = vmatprep.subr.mxu0 0.0
    %110 = vmatpush1.msra.mxu0 0.0
    %111 = vmatprep.subr.mxu0 0.0
    %112 = vmatpush1.msra.mxu0 0.0
    %113 = vmatprep.subr.mxu0 0.0
    %114 = vmatpush1.msra.mxu0 0.0
    %115 = vmatprep.subr.mxu0 0.0
    %116 = vmatpush1.msra.mxu0 0.0
    %117 = vmatprep.subr.mxu0 0.0
    %118 = vmatpush1.msra.mxu0 0.0
    %119 = vmatprep.subr.mxu0 0.0
    %120 = vmatpush1.msra.mxu0 0.0
    %121 = vmatprep.subr.mxu0 0.0
    %122 = vmatpush1.msra.mxu0 0.0
    %123 = vmatprep.subr.mxu0 0.0
    %124 = vmatpush1.msra.mxu0 0.0
    %125 = vmatprep.subr.mxu0 0.0
    %126 = vmatpush1.msra.mxu0 0.0
    %127 = vmatprep.mubr.f32.mxu0 0.0
    %128 = vmatmul.mubr.f32.gmra.mrb[0].mxu0 %v58
    %v129 = vpop.f32.mrb[0].mxu0
    %v130 = vadd.f32 %v54, %v129
    %v131 = vpop.f32.mrb[0].mxu0
    %132 = vmatprep.mubr.f32.mxu0 0.0
    %133 = vmatmul.mubr.f32.gmra.mrb[0].mxu0 %v61
    %v134 = vpop.f32.mrb[0].mxu0
    %v135 = vadd.f32 %v54, %v134
    %v136 = vpop.f32.mrb[0].mxu0
    %137 = vdwg.mxu0
    %vm138 = vcmask 523264
    %139 = vst.msk [vmem:[#allocation7] sm:$0xff] %vm138, %v130
    %140 = vst.msk [vmem:[#allocation7 + $0x8] sm:$0xff] %vm138, %v135
    // Predicated region
    $region22: #{seq_projection.1} parent=1 // pred_check
      _
    $region23: #{seq_projection.1} parent=1 // pred_check_branch
      %142 = sbr.rel (0) target = $region25
    $region24: #{seq_projection.1} parent=1 // pred_region
      %s144 = ssub.s32 256, 256
      %145 = vsyncadd [#allocation4], %s144
      %s146 = sshll.u32 [#allocation7], 4
      %s147 = int_to_ptr.vmem [resolvable:$true] %s146
      %152 = dma.vmem_to_hbm [thread:$0]  %s147, 256, %s3, [#allocation4], 128, 128, 8
    $region25: #{seq_projection.1} parent=1 // pred_fallthru
      _
    // Predicated region
    $region26: #{seq_projection.1} parent=1 // pred_check
      _
    $region27: #{seq_projection.1} parent=1 // pred_check_branch
      %154 = sbr.rel (0) target = $region29
    $region28: #{seq_projection.1} parent=1 // pred_region
      %155 = dma.done [#allocation4], 256
    $region29: #{seq_projection.1} parent=1 // pred_fallthru
      _
    %156 = vsyncpa [#allocation3], 1
    %157 = vsyncpa [#allocation6], 1
    %158 = vsyncpa [#allocation4], 1

</llo_original>
